<compile_context>
chip_gen: v6e
topology: v6e:2x2x1
jax: 0.10.0
libtpu: 0.0.40
codegen_flags: <defaults>
</compile_context>

<pallas_src>
import functools
import math

import jax
import jax.numpy as jnp
from jax.experimental import pallas as pl
from jax.experimental.pallas import tpu as pltpu


def _round_up(x, m):
    return ((x + m - 1) // m) * m


def _dilated_conv1d_kernel(x_ref, w_ref, b_ref, o_ref, col_ref, *,
                           kernel_size, dilation, tile_l, cin):
    """One (group, batch, L-tile) grid step.

    x_ref  : (Lp, Cin)         padded input, resident across L tiles
    w_ref  : (K*Cin, Cout_p)   im2col-folded weights for this group
    b_ref  : (1, Cout_p)       bias (f32, zero-padded)
    o_ref  : (TL, Cout_p)      one output tile (lane-dense Cout_p)
    col_ref: (TL, K*Cin)       VMEM scratch holding the im2col block
    """
    l = pl.program_id(2)
    base = l * tile_l
    if tile_l % 8 == 0:
        base = pl.multiple_of(base, 8)

    # im2col gather: K dilated windows laid out along the contraction axis.
    for k in range(kernel_size):
        col_ref[:, k * cin:(k + 1) * cin] = (
            x_ref[pl.ds(base + k * dilation, tile_l), :])

    # Single fused MXU matmul over all K taps, f32 accumulation.
    acc = jnp.dot(col_ref[...], w_ref[...], preferred_element_type=jnp.float32)
    o_ref[...] = (acc + b_ref[...]).astype(o_ref.dtype)


def same_pad_conv(x_ncl, weight, bias, *, dilation=10, groups=1,
                  tile_l=256, compute_dtype=None):
    """Matches SamePadConv.forward.

    x_ncl : (B, Cin, L)              -- PyTorch NCL layout
    weight: (Cout, Cin//groups, K)   -- PyTorch Conv1d weight layout
    bias  : (Cout,)
    compute_dtype: optionally jnp.bfloat16 to halve HBM traffic / use the
                   native bf16 MXU path (verify tolerance before enabling).
    """
    B, Cin, L = x_ncl.shape
    Cout, Cin_g, K = weight.shape
    assert Cin == Cin_g * groups and Cout % groups == 0
    cout_g = Cout // groups

    receptive_field = (K - 1) * dilation + 1
    padding = receptive_field // 2
    remove = 1 if receptive_field % 2 == 0 else 0
    halo = (K - 1) * dilation
    out_len = L + 2 * padding - halo

    # L tiling: bound the per-step accumulator / output block.
    if out_len <= tile_l:
        tl = out_len                       # single tile == full output length
        out_len_p = out_len
    else:
        tl = tile_l                        # multiple of 8 and 128
        out_len_p = _round_up(out_len, tl)
    n_l = out_len_p // tl

    cout_gp = _round_up(cout_g, 128)       # lane-dense output stores

    out_dtype = x_ncl.dtype
    cdt = out_dtype if compute_dtype is None else compute_dtype
    isz = jnp.dtype(cdt).itemsize
    osz = jnp.dtype(out_dtype).itemsize

    # ---- wrapper glue: layout + zero padding (see TODOs at top of file) ----
    lp_eff = out_len_p + halo
    x_blc = jnp.transpose(x_ncl, (0, 2, 1))                          # (B, L, Cin)
    x_pad = jnp.pad(
        x_blc, ((0, 0), (padding, padding + (out_len_p - out_len)), (0, 0)))
    # (B, Lp, Cin) -> (groups, B, Lp, Cin_g); free data movement for groups==1.
    x_g = jnp.transpose(x_pad.reshape(B, lp_eff, groups, Cin_g),
                        (2, 0, 1, 3)).astype(cdt)

    # weights: (Cout, Cin_g, K) -> per-group im2col layout (K*Cin_g, Cout_p)
    w_g = weight.reshape(groups, cout_g, Cin_g, K)
    w_g = jnp.transpose(w_g, (0, 3, 2, 1)).reshape(groups, K * Cin_g, cout_g)
    w_g = jnp.pad(w_g, ((0, 0), (0, 0), (0, cout_gp - cout_g))).astype(cdt)

    b_g = bias.reshape(groups, 1, cout_g)
    b_g = jnp.pad(b_g, ((0, 0), (0, 0), (0, cout_gp - cout_g))).astype(jnp.float32)

    # ---- VMEM budget & cost estimate ----
    x_blk = lp_eff * Cin_g * isz
    w_blk = K * Cin_g * cout_gp * isz
    o_blk = tl * cout_gp * osz
    col_blk = tl * K * Cin_g * isz
    b_blk = cout_gp * 4
    vmem_need = 2 * (x_blk + w_blk + o_blk + b_blk) + col_blk
    vmem_limit = int(max(vmem_need + (8 << 20), 32 << 20))

    flops = 2 * groups * B * out_len_p * (K * Cin_g) * cout_gp
    bytes_accessed = (groups * B * lp_eff * Cin_g * isz
                      + groups * K * Cin_g * cout_gp * isz
                      + groups * cout_gp * 4
                      + B * out_len_p * groups * cout_gp * osz)

    kernel = functools.partial(_dilated_conv1d_kernel, kernel_size=K,
                               dilation=dilation, tile_l=tl, cin=Cin_g)

    out = pl.pallas_call(
        kernel,
        out_shape=jax.ShapeDtypeStruct((B, out_len_p, groups * cout_gp),
                                       out_dtype),
        grid_spec=pltpu.PrefetchScalarGridSpec(
            num_scalar_prefetch=0,
            grid=(groups, B, n_l),
            in_specs=[
                # full padded sequence per (group, batch); constant L-block
                # index -> stays resident across L tiles.
                pl.BlockSpec((None, None, lp_eff, Cin_g),
                             lambda g, b, l: (g, b, 0, 0)),
                pl.BlockSpec((None, K * Cin_g, cout_gp),
                             lambda g, b, l: (g, 0, 0)),
                pl.BlockSpec((None, 1, cout_gp),
                             lambda g, b, l: (g, 0, 0)),
            ],
            out_specs=pl.BlockSpec((None, tl, cout_gp),
                                   lambda g, b, l: (b, l, g)),
            scratch_shapes=[pltpu.VMEM((tl, K * Cin_g), cdt)],
        ),
        compiler_params=pltpu.CompilerParams(
            dimension_semantics=("parallel", "parallel", "parallel"),
            vmem_limit_bytes=vmem_limit),
        cost_estimate=pl.CostEstimate(flops=flops, transcendentals=0,
                                      bytes_accessed=bytes_accessed),
    )(x_g, w_g, b_g)

    # strip L padding / "remove", drop Cout padding channels, back to NCL.
    final_len = out_len - remove
    if groups == 1:
        out_nlc = out[:, :final_len, :cout_g]
    else:
        out_nlc = jnp.concatenate(
            [out[:, :final_len, g * cout_gp:g * cout_gp + cout_g]
             for g in range(groups)], axis=-1)
    return jnp.transpose(out_nlc, (0, 2, 1))


def _ref_conv(x, w, b, dilation, groups):
    rf = (w.shape[-1] - 1) * dilation + 1
    pad = rf // 2
    r = jax.lax.conv_general_dilated(
        x, w, window_strides=(1,), padding=[(pad, pad)],
        rhs_dilation=(dilation,), feature_group_count=groups,
        dimension_numbers=("NCH", "OIH", "NCH"),
        precision=jax.lax.Precision.HIGHEST) + b[None, :, None]
    if rf % 2 == 0:
        r = r[:, :, :-1]
    return r


if __name__ == "__main__":
    # config 1: module defaults at small shapes (dilation=10, groups=1)
    B, Cin, Cout, L = 2, 4, 8, 16
    K, dilation, groups = 3, 10, 1

    key = jax.random.PRNGKey(0)
    kx, kw, kb = jax.random.split(key, 3)
    x = jax.random.normal(kx, (B, Cin, L), jnp.float32)
    fan_in = (Cin // groups) * K
    bound = 1.0 / math.sqrt(fan_in)
    weight = jax.random.uniform(kw, (Cout, Cin // groups, K), jnp.float32,
                                minval=-bound, maxval=bound)
    bias = jax.random.uniform(kb, (Cout,), jnp.float32,
                              minval=-bound, maxval=bound)

    out = jax.block_until_ready(
        same_pad_conv(x, weight, bias, dilation=dilation, groups=groups))
    ref = _ref_conv(x, weight, bias, dilation, groups)
    assert out.shape == ref.shape, (out.shape, ref.shape)
    assert jnp.allclose(out, ref, atol=1e-4, rtol=1e-4)

    # config 2: grouped, even receptive field, multiple L tiles
    B2, Cin2, Cout2, L2, K2, d2, g2 = 2, 8, 16, 700, 4, 3, 2
    kx2, kw2, kb2 = jax.random.split(jax.random.PRNGKey(1), 3)
    x2 = jax.random.normal(kx2, (B2, Cin2, L2), jnp.float32)
    w2 = 0.1 * jax.random.normal(kw2, (Cout2, Cin2 // g2, K2), jnp.float32)
    b2 = 0.1 * jax.random.normal(kb2, (Cout2,), jnp.float32)
    out2 = jax.block_until_ready(
        same_pad_conv(x2, w2, b2, dilation=d2, groups=g2))
    ref2 = _ref_conv(x2, w2, b2, d2, g2)
    assert out2.shape == ref2.shape, (out2.shape, ref2.shape)
    assert jnp.allclose(out2, ref2, atol=1e-3, rtol=1e-3)

    print("KERNEL_OK")
</pallas_src>

<mosaic_0001>
module attributes {stable_mosaic.version = 11 : i64} {
  func.func @_dilated_conv1d_kernel(%arg0: i32, %arg1: i32, %arg2: i32, %arg3: memref<1x1x36x4xf32, #tpu.memory_space<vmem>>, %arg4: memref<1x12x128xf32, #tpu.memory_space<vmem>>, %arg5: memref<1x1x128xf32, #tpu.memory_space<vmem>>, %arg6: memref<1x16x128xf32, #tpu.memory_space<vmem>>, %arg7: memref<16x12xf32, #tpu.memory_space<vmem>>) attributes {dimension_semantics = [#tpu.dimension_semantics<parallel>, #tpu.dimension_semantics<parallel>, #tpu.dimension_semantics<parallel>], iteration_bounds = array<i64: 1, 2, 1>, scalar_prefetch = 0 : i64, scratch_operands = 1 : i64, tpu.core_type = #tpu.core_type<tc>, window_params = [{transform_indices = @transform_0, window_bounds = array<i64: 1, 1, 36, 4>}, {transform_indices = @transform_1, window_bounds = array<i64: 1, 12, 128>}, {transform_indices = @transform_2, window_bounds = array<i64: 1, 1, 128>}, {transform_indices = @transform_3, window_bounds = array<i64: 1, 16, 128>}]} {
    %c16_i32 = arith.constant 16 : i32
    %0 = arith.muli %arg2, %c16_i32 : i32
    %1 = tpu.assume_multiple %0, 8 : i32
    %c0_i32 = arith.constant 0 : i32
    %2 = arith.addi %1, %c0_i32 : i32
    %c0 = arith.constant 0 : index
    %c0_0 = arith.constant 0 : index
    %3 = arith.index_cast %2 : i32 to index
    %c0_1 = arith.constant 0 : index
    %4 = vector.load %arg3[%c0, %c0_0, %3, %c0_1] : memref<1x1x36x4xf32, #tpu.memory_space<vmem>>, vector<1x1x16x4xf32>
    %5 = vector.shape_cast %4 : vector<1x1x16x4xf32> to vector<16x4xf32>
    %c0_2 = arith.constant 0 : index
    %c0_3 = arith.constant 0 : index
    %6 = vector.load %arg7[%c0_2, %c0_3] : memref<16x12xf32, #tpu.memory_space<vmem>>, vector<16x4xf32>
    tpu.vector_store %arg7[%c0_2, %c0_3], %5 {strides = array<i32>} : memref<16x12xf32, #tpu.memory_space<vmem>>, vector<16x4xf32>,
    %c10_i32 = arith.constant 10 : i32
    %7 = arith.addi %1, %c10_i32 : i32
    %c0_4 = arith.constant 0 : index
    %c0_5 = arith.constant 0 : index
    %8 = arith.index_cast %7 : i32 to index
    %c0_6 = arith.constant 0 : index
    %9 = vector.load %arg3[%c0_4, %c0_5, %8, %c0_6] : memref<1x1x36x4xf32, #tpu.memory_space<vmem>>, vector<1x1x16x4xf32>
    %10 = vector.shape_cast %9 : vector<1x1x16x4xf32> to vector<16x4xf32>
    %c0_7 = arith.constant 0 : index
    %c4 = arith.constant 4 : index
    %11 = vector.load %arg7[%c0_7, %c4] : memref<16x12xf32, #tpu.memory_space<vmem>>, vector<16x4xf32>
    tpu.vector_store %arg7[%c0_7, %c4], %10 {strides = array<i32>} : memref<16x12xf32, #tpu.memory_space<vmem>>, vector<16x4xf32>,
    %c20_i32 = arith.constant 20 : i32
    %12 = arith.addi %1, %c20_i32 : i32
    %c0_8 = arith.constant 0 : index
    %c0_9 = arith.constant 0 : index
    %13 = arith.index_cast %12 : i32 to index
    %c0_10 = arith.constant 0 : index
    %14 = vector.load %arg3[%c0_8, %c0_9, %13, %c0_10] : memref<1x1x36x4xf32, #tpu.memory_space<vmem>>, vector<1x1x16x4xf32>
    %15 = vector.shape_cast %14 : vector<1x1x16x4xf32> to vector<16x4xf32>
    %c0_11 = arith.constant 0 : index
    %c8 = arith.constant 8 : index
    %16 = vector.load %arg7[%c0_11, %c8] : memref<16x12xf32, #tpu.memory_space<vmem>>, vector<16x4xf32>
    tpu.vector_store %arg7[%c0_11, %c8], %15 {strides = array<i32>} : memref<16x12xf32, #tpu.memory_space<vmem>>, vector<16x4xf32>,
    %c0_12 = arith.constant 0 : index
    %c0_13 = arith.constant 0 : index
    %17 = vector.load %arg7[%c0_12, %c0_13] : memref<16x12xf32, #tpu.memory_space<vmem>>, vector<16x12xf32>
    %c0_14 = arith.constant 0 : index
    %c0_15 = arith.constant 0 : index
    %c0_16 = arith.constant 0 : index
    %18 = vector.load %arg4[%c0_14, %c0_15, %c0_16] : memref<1x12x128xf32, #tpu.memory_space<vmem>>, vector<1x12x128xf32>
    %19 = vector.shape_cast %18 : vector<1x12x128xf32> to vector<12x128xf32>
    %cst = arith.constant dense<0.000000e+00> : vector<16x128xf32>
    %20 = tpu.matmul %17, %19, %cst {dimension_numbers = #tpu.dot_dimension_numbers<[1], [0], [0], [1], [0, 0, 1, 1], [], []>} : vector<16x12xf32>, vector<12x128xf32>, vector<16x128xf32> -> vector<16x128xf32>
    %c0_17 = arith.constant 0 : index
    %c0_18 = arith.constant 0 : index
    %c0_19 = arith.constant 0 : index
    %21 = vector.load %arg5[%c0_17, %c0_18, %c0_19] : memref<1x1x128xf32, #tpu.memory_space<vmem>>, vector<1x1x128xf32>
    %22 = vector.shape_cast %21 : vector<1x1x128xf32> to vector<1x128xf32>
    %23 = vector.broadcast %22 : vector<1x128xf32> to vector<16x128xf32>
    %24 = arith.addf %20, %23 : vector<16x128xf32>
    %c0_20 = arith.constant 0 : index
    %c0_21 = arith.constant 0 : index
    %c0_22 = arith.constant 0 : index
    %25 = vector.load %arg6[%c0_20, %c0_21, %c0_22] : memref<1x16x128xf32, #tpu.memory_space<vmem>>, vector<1x16x128xf32>
    %26 = vector.shape_cast %25 : vector<1x16x128xf32> to vector<16x128xf32>
    %27 = vector.shape_cast %24 : vector<16x128xf32> to vector<1x16x128xf32>
    tpu.vector_store %arg6[%c0_20, %c0_21, %c0_22], %27 {strides = array<i32>} : memref<1x16x128xf32, #tpu.memory_space<vmem>>, vector<1x16x128xf32>,
    return
  }
  func.func @transform_0(%arg0: i32, %arg1: i32, %arg2: i32) -> (i32, i32, i32, i32) {
    %c0_i32 = arith.constant 0 : i32
    %c0_i32_0 = arith.constant 0 : i32
    %c0_i32_1 = arith.constant 0 : i32
    return %arg0, %arg1, %c0_i32, %c0_i32_0 : i32, i32, i32, i32
  }
  func.func @transform_1(%arg0: i32, %arg1: i32, %arg2: i32) -> (i32, i32, i32) {
    %c0_i32 = arith.constant 0 : i32
    %c0_i32_0 = arith.constant 0 : i32
    %c0_i32_1 = arith.constant 0 : i32
    return %arg0, %c0_i32, %c0_i32_0 : i32, i32, i32
  }
  func.func @transform_2(%arg0: i32, %arg1: i32, %arg2: i32) -> (i32, i32, i32) {
    %c0_i32 = arith.constant 0 : i32
    %c0_i32_0 = arith.constant 0 : i32
    %c0_i32_1 = arith.constant 0 : i32
    return %arg0, %c0_i32, %c0_i32_0 : i32, i32, i32
  }
  func.func @transform_3(%arg0: i32, %arg1: i32, %arg2: i32) -> (i32, i32, i32) {
    %c0_i32 = arith.constant 0 : i32
    return %arg1, %arg2, %arg0 : i32, i32, i32
  }
}

</mosaic_0001>

<llo_original>
// kernel: tpu_custom_call.1
$region0: #{tpu_custom_call.1}
  #allocation0 [shape = 'u32[]', space=smem, size = 0x4, offset = 0x4, fixed_abs, tag = 'smem constant byte address 0x4 - core index']
  #allocation1 [shape = 'u32[144,128]{1,0:T(1,128)}', space=vmem, size = 0x12000, scoped, tag = 'internal scratch']
  #allocation2 [shape = 'f32[16,12]{1,0:T(8,128)}', space=vmem, size = 0x2000, scoped, tag = 'scratch operand']
  %s0 = inlined_call_operand.vmem [shape: f32[1,2,36,4], index: 0, kind: input, shape index: {}]
  %s1 = inlined_call_operand.vmem [shape: f32[1,12,128], index: 1, kind: input, shape index: {}]
  %s2 = inlined_call_operand.vmem [shape: f32[1,1,128], index: 2, kind: input, shape index: {}]
  %s3 = inlined_call_operand.hbm [shape: f32[2,16,128], index: 3, kind: output, shape index: {}]
  %s4 = sld [smem:[#allocation0]]
  $region45: #{tpu_custom_call.1} parent=0
    _
  %s6 = ssub.s32 1, %s4
  %s7 = scalar_select 0, %s6, %s4
  $region1: #{tpu_custom_call.1} parent=0
    #allocation3 [shape = 'u8[16384]{0}', space=vmem, size = 0x4000, scoped, tag = 'output window, operand 0']
    #allocation4 [shape = 's32[2]{0}', space=sflag, size = 0x8, scoped, tag = 'scoped memory for tpu_custom_call.1']
    %8 = vsyncpa [#allocation4], 0
    %s9 = scalar_lea.sflag [#allocation4], 1
    %10 = vsyncpa %s9, 0
    loop: start=0, step=1, limit=4
    $region2: #{tpu_custom_call.1} parent=1 // loop_pre_header
      _
    $region3: #{tpu_custom_call.1} parent=1 // loop_header
      %s12 = sphi 0, %s16
      %p13 = scmp.ge.s32.totalorder %s12, 4
      %s19 = sphi 0, %s38
      %s20 = sphi 0, %s34
      %s21 = sphi 0, %s30
      %s22 = sphi 0, %s19
      %s23 = sphi 0, %s20
      %s24 = sphi 0, %s21
      %s25 = sphi 0, %s22
      %s26 = sphi 0, %s23
      %s27 = sphi 0, %s24
      %s43 = sphi 0, %s45
      %s46 = sphi 0, %s43
      %s47 = sphi 0, %s46
      %s63 = sphi 0, %s47
      %s69 = sphi 0, %s71
      %s72 = sphi 0, %s69
      %s73 = sphi 0, %s72
      %s89 = sphi 0, %s73
      %s95 = sphi 0, %s97
      %s98 = sphi 0, %s95
      %s99 = sphi 0, %s98
      %s115 = sphi 0, %s99
      %s125 = sphi 0, %s127
      %s128 = sphi 0, %s125
      %s129 = sphi 0, %s128
      %s145 = sphi 0, %s129
    $region4: #{tpu_custom_call.1} parent=1 // loop_header_branch
      %15 = sbr.rel (%p13) target = $region8
    $region5: #{tpu_custom_call.1} parent=1 // loop_body
      %s17 = ssub.s32 %s12, 1
      %s18 = ssub.s32 %s12, 2
      %s28 = sadd.s32 1, %s21
      %p29 = scmp.ge.s32.totalorder %s28, 1
      %s30 = scalar_select %p29, 0, %s28
      %s31 = sadd.s32 1, %s20
      %s32 = scalar_select %p29, %s31, %s20
      %p33 = scmp.ge.s32.totalorder %s32, 2
      %s34 = scalar_select %p33, 0, %s32
      %s35 = sadd.s32 1, %s19
      %s36 = scalar_select %p33, %s35, %s19
      %p37 = scmp.ge.s32.totalorder %s36, 1
      %s38 = scalar_select %p37, 0, %s36
      %s39 = ssub.s32 %s19, %s38
      %s40 = ssub.s32 %s20, %s34
      %s41 = sor.u32 %s39, %s40
      %p42 = scmp.eq.s32.totalorder %s41, 0
      %s44 = sadd.s32 %s43, 1
      %s45 = scalar_select %p42, %s43, %s44
      %p48 = pneg %p42
      %p49 = scmp.eq.s32.totalorder %s12, 1
      %p50 = por %p48, %p49
      %p51 = scmp.ne.s32.totalorder %s43, %s46
      %p52 = scmp.eq.s32.totalorder %s12, 0
      %p53 = por %p51, %p52
      %p54 = scmp.ne.s32.totalorder %s43, %s46
      %p55 = scmp.eq.s32.totalorder %s17, 1
      %p56 = por %p54, %p55
      %p57 = scmp.ne.s32.totalorder %s46, %s47
      %p58 = scmp.eq.s32.totalorder %s17, 0
      %p59 = por %p57, %p58
      %p60 = scmp.ne.s32.totalorder %s46, %s47
      %p61 = scmp.eq.s32.totalorder %s18, 1
      %p62 = por %p60, %p61
      %p64 = scmp.ne.s32.totalorder %s47, %s63
      %p65 = scmp.eq.s32.totalorder %s18, 0
      %p66 = por %p64, %p65
      %s67 = ssub.s32 %s19, %s38
      %p68 = scmp.eq.s32.totalorder %s67, 0
      %s70 = sadd.s32 %s69, 1
      %s71 = scalar_select %p68, %s69, %s70
      %p74 = pneg %p68
      %p75 = scmp.eq.s32.totalorder %s12, 1
      %p76 = por %p74, %p75
      %p77 = scmp.ne.s32.totalorder %s69, %s72
      %p78 = scmp.eq.s32.totalorder %s12, 0
      %p79 = por %p77, %p78
      %p80 = scmp.ne.s32.totalorder %s69, %s72
      %p81 = scmp.eq.s32.totalorder %s17, 1
      %p82 = por %p80, %p81
      %p83 = scmp.ne.s32.totalorder %s72, %s73
      %p84 = scmp.eq.s32.totalorder %s17, 0
      %p85 = por %p83, %p84
      %p86 = scmp.ne.s32.totalorder %s72, %s73
      %p87 = scmp.eq.s32.totalorder %s18, 1
      %p88 = por %p86, %p87
      %p90 = scmp.ne.s32.totalorder %s73, %s89
      %p91 = scmp.eq.s32.totalorder %s18, 0
      %p92 = por %p90, %p91
      %s93 = ssub.s32 %s19, %s38
      %p94 = scmp.eq.s32.totalorder %s93, 0
      %s96 = sadd.s32 %s95, 1
      %s97 = scalar_select %p94, %s95, %s96
      %p100 = pneg %p94
      %p101 = scmp.eq.s32.totalorder %s12, 1
      %p102 = por %p100, %p101
      %p103 = scmp.ne.s32.totalorder %s95, %s98
      %p104 = scmp.eq.s32.totalorder %s12, 0
      %p105 = por %p103, %p104
      %p106 = scmp.ne.s32.totalorder %s95, %s98
      %p107 = scmp.eq.s32.totalorder %s17, 1
      %p108 = por %p106, %p107
      %p109 = scmp.ne.s32.totalorder %s98, %s99
      %p110 = scmp.eq.s32.totalorder %s17, 0
      %p111 = por %p109, %p110
      %p112 = scmp.ne.s32.totalorder %s98, %s99
      %p113 = scmp.eq.s32.totalorder %s18, 1
      %p114 = por %p112, %p113
      %p116 = scmp.ne.s32.totalorder %s99, %s115
      %p117 = scmp.eq.s32.totalorder %s18, 0
      %p118 = por %p116, %p117
      %s119 = ssub.s32 %s20, %s34
      %s120 = ssub.s32 %s21, %s30
      %s121 = sor.u32 %s119, %s120
      %s122 = ssub.s32 %s19, %s38
      %s123 = sor.u32 %s121, %s122
      %p124 = scmp.eq.s32.totalorder %s123, 0
      %s126 = sadd.s32 %s125, 1
      %s127 = scalar_select %p124, %s125, %s126
      %p130 = pneg %p124
      %p131 = scmp.eq.s32.totalorder %s12, 1
      %p132 = por %p130, %p131
      %p133 = scmp.ne.s32.totalorder %s125, %s128
      %p134 = scmp.eq.s32.totalorder %s12, 0
      %p135 = por %p133, %p134
      %p136 = scmp.ne.s32.totalorder %s125, %s128
      %p137 = scmp.eq.s32.totalorder %s17, 1
      %p138 = por %p136, %p137
      %p139 = scmp.ne.s32.totalorder %s128, %s129
      %p140 = scmp.eq.s32.totalorder %s17, 0
      %p141 = por %p139, %p140
      %p142 = scmp.ne.s32.totalorder %s128, %s129
      %p143 = scmp.eq.s32.totalorder %s18, 1
      %p144 = por %p142, %p143
      %p146 = scmp.ne.s32.totalorder %s129, %s145
      %p147 = scmp.eq.s32.totalorder %s18, 0
      %p148 = por %p146, %p147
      %p149 = scmp.le.s32.totalorder 1, %s12
      %p150 = scmp.lt.s32.totalorder %s12, 3
      %p151 = pnand %p149, %p150
      %p152 = pneg %p151
      // Predicated region
      $region9: #{tpu_custom_call.1} parent=5 // pred_check
        _
      $region10: #{tpu_custom_call.1} parent=5 // pred_check_branch
        %154 = sbr.rel (%p151) target = $region12
      $region11: #{tpu_custom_call.1} parent=5 // pred_region
        %s155 = ssub.s32 %s12, 1
        // Predicated region
        $region13: #{tpu_custom_call.1} parent=11 // pred_check
          %p156 = pneg %p85
        $region14: #{tpu_custom_call.1} parent=11 // pred_check_branch
          %158 = sbr.rel (%p156) target = $region16
        $region15: #{tpu_custom_call.1} parent=11 // pred_region
          %p159 = scmp.lt.s32.totalorder %s22, 0
          %s160 = scalar_select %p159, %s22, 0
          %s161 = smul.addr %s160, 2
          %s162 = smul.addr %s161, 8
          %s163 = scalar_lea.vmem %s1, %s162
        $region16: #{tpu_custom_call.1} parent=11 // pred_fallthru
          _
        // Predicated region
        $region17: #{tpu_custom_call.1} parent=11 // pred_check
          %p164 = pneg %p111
        $region18: #{tpu_custom_call.1} parent=11 // pred_check_branch
          %166 = sbr.rel (%p164) target = $region20
        $region19: #{tpu_custom_call.1} parent=11 // pred_region
          %p167 = scmp.lt.s32.totalorder %s22, 0
          %s168 = scalar_select %p167, %s22, 0
          %s169 = scalar_lea.vmem %s2, %s168
        $region20: #{tpu_custom_call.1} parent=11 // pred_fallthru
          _
      $region12: #{tpu_custom_call.1} parent=5 // pred_fallthru
        _
      %p170 = scmp.lt.s32.totalorder %s12, 2
      // Predicated region
      $region21: #{tpu_custom_call.1} parent=5 // pred_check
        %p171 = pneg %p170
      $region22: #{tpu_custom_call.1} parent=5 // pred_check_branch
        %173 = sbr.rel (%p171) target = $region24
      $region23: #{tpu_custom_call.1} parent=5 // pred_region
        // Predicated region
        $region25: #{tpu_custom_call.1} parent=23 // pred_check
          %p174 = pneg %p53
        $region26: #{tpu_custom_call.1} parent=23 // pred_check_branch
          %176 = sbr.rel (%p174) target = $region28
        $region27: #{tpu_custom_call.1} parent=23 // pred_region
          %p177 = scmp.lt.s32.totalorder %s19, 0
          %s178 = scalar_select %p177, %s19, 0
          %p179 = scmp.lt.s32.totalorder %s20, 1
          %s180 = scalar_select %p179, %s20, 1
          %s181 = smul.addr %s180, 5
          %s182 = smul.addr %s178, 10
          %s183 = sadd.s32 %s181, %s182
          %s184 = smul.addr %s183, 8
          %s185 = scalar_lea.vmem %s0, %s184
        $region28: #{tpu_custom_call.1} parent=23 // pred_fallthru
          _
      $region24: #{tpu_custom_call.1} parent=5 // pred_fallthru
        _
      %p186 = scmp.le.s32.totalorder 1, %s12
      %p187 = scmp.lt.s32.totalorder %s12, 3
      %p188 = pnand %p186, %p187
      %p189 = pneg %p188
      // Predicated region
      $region29: #{tpu_custom_call.1} parent=5 // pred_check
        _
      $region30: #{tpu_custom_call.1} parent=5 // pred_check_branch
        %191 = sbr.rel (%p188) target = $region32
      $region31: #{tpu_custom_call.1} parent=5 // pred_region
        %s192 = ssub.s32 %s12, 1
        %p193 = scmp.lt.s32.totalorder %s22, 0
        %s194 = scalar_select %p193, %s22, 0
        %p195 = scmp.lt.s32.totalorder %s23, 1
        %s196 = scalar_select %p195, %s23, 1
        %s197 = smul.addr %s196, 5
        %s198 = smul.addr %s194, 10
        %s199 = sadd.s32 %s197, %s198
        %s200 = smul.addr %s199, 8
        %s201 = scalar_lea.vmem %s0, %s200
        %p202 = pneg %p59
        %p203 = pneg %p56
        %p204 = scmp.lt.s32.totalorder %s22, 0
        %s205 = scalar_select %p204, %s22, 0
        %s206 = smul.addr %s205, 2
        %s207 = smul.addr %s206, 8
        %s208 = scalar_lea.vmem %s1, %s207
        %p209 = pneg %p85
        %p210 = pneg %p82
        %p211 = scmp.lt.s32.totalorder %s22, 0
        %s212 = scalar_select %p211, %s22, 0
        %s213 = scalar_lea.vmem %s2, %s212
        %p214 = pneg %p111
        %p215 = pneg %p108
        %p216 = pneg %p141
        %p217 = pneg %p138
        %s218 = sand.u32 %s128, 1
        %s219 = scalar_lea.sflag [#allocation4], %s218
        %s220 = sand.u32 %s128, 1
        %s221 = smul.addr %s220, 16
        %s222 = scalar_lea.vmem [#allocation3], %s221
        %p223 = scmp.lt.s32.totalorder %s22, 0
        %s224 = scalar_select %p223, %s22, 0
        %p225 = scmp.lt.s32.totalorder %s23, 1
        %s226 = scalar_select %p225, %s23, 1
        %s227 = smul.addr %s226, 5
        %s228 = smul.addr %s224, 10
        %s229 = sadd.s32 %s227, %s228
        %s230 = smul.addr %s229, 8
        %s231 = scalar_lea.vmem %s0, %s230
        %p232 = scmp.lt.s32.totalorder %s22, 0
        %s233 = scalar_select %p232, %s22, 0
        %s234 = smul.addr %s233, 2
        %s235 = smul.addr %s234, 8
        %s236 = scalar_lea.vmem %s1, %s235
        %p237 = scmp.lt.s32.totalorder %s22, 0
        %s238 = scalar_select %p237, %s22, 0
        %s239 = scalar_lea.vmem %s2, %s238
        %s240 = smul.u32 2, %s24
        %s241 = smul.u32 %s24, 16
        %s242 = scalar_lea.vmem %s231, %s241
        %v243 = vld [vmem:[%s242] sm:$0xff]
        %v244 = vld [vmem:[%s242 + $0x8] sm:$0xff]
        %vm245 = vcmask 31744
        %246 = vst.msk [vmem:[#allocation2] sm:$0xff] %vm245, %v243
        %247 = vst.msk [vmem:[#allocation2 + $0x8] sm:$0xff] %vm245, %v244
        %s248 = sadd.s32 %s241, 10
        %s249 = scalar_lea.vmem %s231, %s248
        %v250 = vld [vmem:[%s249] sm:$0xff]
        %v251 = vld [vmem:[%s249 + $0x8] sm:$0xff]
        %254 = vrot.lane.b32.xlu0 %v250, 4
        %v255 = vpop.permute.xlu0 %254
        %256 = vrot.lane.b32.xlu0 %v251, 4
        %v257 = vpop.permute.xlu0 %256
        %vm260 = vcmask 64544
        %261 = vst.msk [vmem:[#allocation2] sm:$0xff] %vm260, %v255
        %262 = vst.msk [vmem:[#allocation2 + $0x8] sm:$0xff] %vm260, %v257
        %s263 = sadd.s32 %s241, 20
        %s264 = scalar_lea.vmem %s231, %s263
        %v265 = vld [vmem:[%s264] sm:$0xff]
        %v266 = vld [vmem:[%s264 + $0x8] sm:$0xff]
        %269 = vrot.lane.b32.xlu0 %v265, 8
        %v270 = vpop.permute.xlu0 %269
        %271 = vrot.lane.b32.xlu0 %v266, 8
        %v272 = vpop.permute.xlu0 %271
        %vm275 = vcmask 97344
        %276 = vst.msk [vmem:[#allocation2] sm:$0xff] %vm275, %v270
        %277 = vst.msk [vmem:[#allocation2 + $0x8] sm:$0xff] %vm275, %v272
        %v278 = vld [vmem:[#allocation2] sm:$0xff]
        %v279 = vld [vmem:[#allocation2 + $0x8] sm:$0xff]
        %v280 = vld [vmem:[%s236] sm:$0xff]
        %v281 = vld [vmem:[%s236 + $0x8] sm:$0xf]
        %v282 = vld [vmem:[%s239] sm:$0x1]
        %v284 = vlaneseq
        %v285 = vshrl.u32 %v284, 7
        %v286 = vsub.s32 0, %v285
        %v287 = vrot.slane %v282, %v286
        %vm289 = vcmask 97280
        %v291 = vsel %vm289, %v278, 0
        %v294 = vsel %vm289, %v279, 0
        %vm296 = vcmask 1043456
        %v298 = vsel %vm296, %v281, 0
        %300 = vmatprep.subr.mxu0 0.0
        %301 = vmatpush1.msra.mxu0 0.0
        %302 = vmatprep.subr.mxu0 0.0
        %303 = vmatpush1.msra.mxu0 0.0
        %304 = vmatprep.subr.mxu0 0.0
        %305 = vmatpush1.msra.mxu0 0.0
        %306 = vmatprep.subr.mxu0 0.0
        %307 = vmatpush1.msra.mxu0 0.0
        %308 = vmatprep.subr.mxu0 0.0
        %309 = vmatpush1.msra.mxu0 0.0
        %310 = vmatprep.subr.mxu0 0.0
        %311 = vmatpush1.msra.mxu0 0.0
        %312 = vmatprep.subr.mxu0 0.0
        %313 = vmatpush1.msra.mxu0 0.0
        %314 = vmatprep.subr.mxu0 0.0
        %315 = vmatpush1.msra.mxu0 0.0
        %316 = vmatprep.subr.mxu0 0.0
        %317 = vmatpush1.msra.mxu0 0.0
        %318 = vmatprep.subr.mxu0 0.0
        %319 = vmatpush1.msra.mxu0 0.0
        %320 = vmatprep.subr.mxu0 0.0
        %321 = vmatpush1.msra.mxu0 0.0
        %322 = vmatprep.subr.mxu0 0.0
        %323 = vmatpush1.msra.mxu0 0.0
        %324 = vmatprep.subr.mxu0 0.0
        %325 = vmatpush1.msra.mxu0 0.0
        %326 = vmatprep.subr.mxu0 0.0
        %327 = vmatpush1.msra.mxu0 0.0
        %328 = vmatprep.subr.mxu0 0.0
        %329 = vmatpush1.msra.mxu0 %v298
        %330 = vmatprep.subr.mxu0 0.0
        %331 = vmatpush1.msra.mxu0 %v280
        %332 = vmatprep.subr.mxu0 0.0
        %333 = vmatpush2.msra.mxu0 0.0
        %334 = vmatprep.subr.mxu0 0.0
        %335 = vmatpush2.msra.mxu0 0.0
        %336 = vmatprep.subr.mxu0 0.0
        %337 = vmatpush2.msra.mxu0 0.0
        %338 = vmatprep.subr.mxu0 0.0
        %339 = vmatpush2.msra.mxu0 0.0
        %340 = vmatprep.subr.mxu0 0.0
        %341 = vmatpush2.msra.mxu0 0.0
        %342 = vmatprep.subr.mxu0 0.0
        %343 = vmatpush2.msra.mxu0 0.0
        %344 = vmatprep.subr.mxu0 0.0
        %345 = vmatpush2.msra.mxu0 0.0
        %346 = vmatprep.subr.mxu0 0.0
        %347 = vmatpush2.msra.mxu0 0.0
        %348 = vmatprep.subr.mxu0 0.0
        %349 = vmatpush2.msra.mxu0 0.0
        %350 = vmatprep.subr.mxu0 0.0
        %351 = vmatpush2.msra.mxu0 0.0
        %352 = vmatprep.subr.mxu0 0.0
        %353 = vmatpush2.msra.mxu0 0.0
        %354 = vmatprep.subr.mxu0 0.0
        %355 = vmatpush2.msra.mxu0 0.0
        %356 = vmatprep.subr.mxu0 0.0
        %357 = vmatpush2.msra.mxu0 0.0
        %358 = vmatprep.subr.mxu0 0.0
        %359 = vmatpush2.msra.mxu0 0.0
        %360 = vmatprep.subr.mxu0 0.0
        %361 = vmatpush2.msra.mxu0 0.0
        %362 = vmatprep.subr.mxu0 0.0
        %363 = vmatpush2.msra.mxu0 0.0
        %364 = vmatprep.mubr.f32.mxu0 0.0
        %365 = vmatmul.mubr.f32.gmra.mxu0 %v291
        %v366 = vpop.f32.mrf.mxu0
        %v367 = vadd.f32 %v287, %v366
        %v368 = vpop.f32.mrf.mxu0
        %369 = vmatprep.mubr.f32.mxu0 0.0
        %370 = vmatmul.mubr.f32.gmra.mxu0 %v294
        %v371 = vpop.f32.mrf.mxu0
        %v372 = vadd.f32 %v287, %v371
        %v373 = vpop.f32.mrf.mxu0
        %374 = vdwg.mxu0
        %375 = vst [vmem:[%s222] sm:$0xff] %v367
        %376 = vst [vmem:[%s222 + $0x8] sm:$0xff] %v372
        %s377 = sand.u32 %s128, 1
        %s378 = scalar_lea.sflag [#allocation4], %s377
        %s379 = sand.u32 %s128, 1
        %s380 = smul.addr %s379, 16
        %s381 = scalar_lea.vmem [#allocation3], %s380
        // Predicated region
        $region33: #{tpu_custom_call.1} parent=31 // pred_check
          %p382 = pneg %p138
        $region34: #{tpu_custom_call.1} parent=31 // pred_check_branch
          %384 = sbr.rel (%p382) target = $region36
        $region35: #{tpu_custom_call.1} parent=31 // pred_region
          %s385 = smul.u32 2, %s24
          %s387 = ssub.s32 256, 256
          %388 = vsyncadd %s378, %s387
          %s389 = sadd.s32 %s22, %s385
          %s390 = smul.addr %s23, 2
          %s391 = sadd.s32 %s389, %s390
          %s392 = smul.addr %s391, 128
          %s393 = scalar_lea.hbm %s3, %s392
          %s394 = sshll.u32 %s381, 4
          %s395 = int_to_ptr.vmem [resolvable:$true] %s394
          %400 = dma.vmem_to_hbm [thread:$0]  %s395, 256, %s393, %s378, 128, 128, 8
        $region36: #{tpu_custom_call.1} parent=31 // pred_fallthru
          _
      $region32: #{tpu_custom_call.1} parent=5 // pred_fallthru
        _
      %p401 = scmp.le.s32.totalorder 2, %s12
      // Predicated region
      $region37: #{tpu_custom_call.1} parent=5 // pred_check
        %p402 = pneg %p401
      $region38: #{tpu_custom_call.1} parent=5 // pred_check_branch
        %404 = sbr.rel (%p402) target = $region40
      $region39: #{tpu_custom_call.1} parent=5 // pred_region
        %s405 = ssub.s32 %s12, 2
        // Predicated region
        $region41: #{tpu_custom_call.1} parent=39 // pred_check
          %p406 = pneg %p144
        $region42: #{tpu_custom_call.1} parent=39 // pred_check_branch
          %408 = sbr.rel (%p406) target = $region44
        $region43: #{tpu_custom_call.1} parent=39 // pred_region
          %s409 = sand.u32 %s129, 1
          %s410 = scalar_lea.sflag [#allocation4], %s409
          %s411 = sand.u32 %s129, 1
          %s412 = smul.addr %s411, 16
          %s413 = scalar_lea.vmem [#allocation3], %s412
          %414 = dma.done %s410, 256
        $region44: #{tpu_custom_call.1} parent=39 // pred_fallthru
          _
      $region40: #{tpu_custom_call.1} parent=5 // pred_fallthru
        _
    $region6: #{tpu_custom_call.1} parent=1 // loop_footer
      %s16 = sadd.s32 1, %s12
    $region7: #{tpu_custom_call.1} parent=1 // loop_footer_branch
      %11 = sbr.rel target = $region3
    $region8: #{tpu_custom_call.1} parent=1 // loop_exit
      _
    %415 = vsyncpa [#allocation4], 1
    %s416 = scalar_lea.sflag [#allocation4], 1
    %417 = vsyncpa %s416, 1

</llo_original>
